<compile_context>
chip_gen: v5e
topology: v5e:2x2
jax: 0.10.0
libtpu: 0.0.40
codegen_flags: <defaults>
</compile_context>

<pallas_src>
import functools

import jax
import jax.numpy as jnp
from jax.experimental import pallas as pl
from jax.experimental.pallas import tpu as pltpu


def _round_up(x, m):
    return ((x + m - 1) // m) * m


def _make_odefunc_kernel(dim, use_vpu_first_layer):
    def kernel(y_ref, w1_ref, b1_ref, w2_ref, b2_ref, o_ref):
        y = y_ref[...]            # (dim, TILE_B)   batch on the lane axis
        w1 = w1_ref[...]          # (H, dim)        PyTorch (out, in) layout
        if use_vpu_first_layer:
            # Contraction depth == dim is tiny: VPU broadcast multiply-adds
            # avoid paying a full MXU round trip for ~no work.
            acc = w1[:, 0:1] * y[0:1, :]
            for d in range(1, dim):
                acc = acc + w1[:, d:d + 1] * y[d:d + 1, :]
        else:
            acc = jnp.dot(w1, y, preferred_element_type=jnp.float32)
        h = jnp.tanh(acc + b1_ref[...])                        # (H, TILE_B), f32 on EUP
        out = jnp.dot(w2_ref[...], h,                          # (dim, TILE_B) via MXU
                      preferred_element_type=jnp.float32) + b2_ref[...]
        o_ref[...] = out.astype(o_ref.dtype)
    return kernel


@functools.partial(jax.jit, static_argnames=("tile_b",))
def odefunc_forward(t, y, w1, b1, w2, b2, *, tile_b=512):
    """Pallas equivalent of ODEFunc.forward(t, y) == net(y).

    y : (B, dim) f32
    w1: (H, dim), b1: (H,)   -- PyTorch Linear (out, in) layout
    w2: (dim, H), b2: (dim,)
    """
    del t  # unused in the reference forward
    B, dim = y.shape
    H = w1.shape[0]

    # Feature-major: batch on the lane axis.
    y_t = y.T                                       # (dim, B)

    # Lane-aligned batch tile; do not over-allocate for tiny B.
    tb = min(tile_b, _round_up(B, 128))
    b_pad = _round_up(B, tb)
    if b_pad != B:
        y_t = jnp.pad(y_t, ((0, 0), (0, b_pad - B)))

    b1c = b1.reshape(H, 1)
    b2c = b2.reshape(dim, 1)

    kernel = _make_odefunc_kernel(dim, use_vpu_first_layer=dim <= 8)

    out_t = pl.pallas_call(
        kernel,
        out_shape=jax.ShapeDtypeStruct((dim, b_pad), y.dtype),
        grid=(b_pad // tb,),
        in_specs=[
            pl.BlockSpec((dim, tb), lambda i: (0, i)),   # Y^T tile (batch on lanes)
            pl.BlockSpec((H, dim), lambda i: (0, 0)),    # W1, VMEM-resident
            pl.BlockSpec((H, 1),   lambda i: (0, 0)),    # b1
            pl.BlockSpec((dim, H), lambda i: (0, 0)),    # W2
            pl.BlockSpec((dim, 1), lambda i: (0, 0)),    # b2
        ],
        out_specs=pl.BlockSpec((dim, tb), lambda i: (0, i)),
        compiler_params=pltpu.CompilerParams(
            dimension_semantics=("parallel",)),
    )(y_t, w1, b1c, w2, b2c)

    return out_t[:, :B].T                            # back to (B, dim)


def init_params(key, dim, hidden=50, dtype=jnp.float32):
    """Matches nn.init.normal_(weight, std=0.1); bias = 0. PyTorch (out, in) layout."""
    k1, k2 = jax.random.split(key)
    w1 = jax.random.normal(k1, (hidden, dim), dtype) * 0.1
    b1 = jnp.zeros((hidden,), dtype)
    w2 = jax.random.normal(k2, (dim, hidden), dtype) * 0.1
    b2 = jnp.zeros((dim,), dtype)
    return w1, b1, w2, b2


def _reference(y, w1, b1, w2, b2):
    # Plain-JAX replica of nn.Sequential(Linear, Tanh, Linear) with (out, in) weights.
    return jnp.tanh(y @ w1.T + b1) @ w2.T + b2


if __name__ == "__main__":
    key = jax.random.PRNGKey(0)
    k_params, k_y1, k_y2 = jax.random.split(key, 3)

    dim, hidden = 2, 50           # LC(cols=['mjd','flux']) -> dim = 2
    w1, b1, w2, b2 = init_params(k_params, dim, hidden)
    t = jnp.float32(0.0)          # unused, mirrors the PyTorch signature

    # Small-batch case (single padded lane tile).
    y_small = jax.random.normal(k_y1, (8, dim), jnp.float32)
    out_small = jax.block_until_ready(odefunc_forward(t, y_small, w1, b1, w2, b2))
    assert out_small.shape == y_small.shape
    assert jnp.allclose(out_small, _reference(y_small, w1, b1, w2, b2),
                        atol=1e-5, rtol=1e-5)

    # Multi-tile case: exercises the "parallel" batch grid (tile_b=128 -> grid=(2,)).
    y_big = jax.random.normal(k_y2, (256, dim), jnp.float32)
    out_big = jax.block_until_ready(
        odefunc_forward(t, y_big, w1, b1, w2, b2, tile_b=128))
    assert out_big.shape == y_big.shape
    assert jnp.allclose(out_big, _reference(y_big, w1, b1, w2, b2),
                        atol=1e-5, rtol=1e-5)

    print("KERNEL_OK")
</pallas_src>

<mosaic_0001>
module attributes {stable_mosaic.version = 11 : i64} {
  func.func @kernel(%arg0: i32, %arg1: memref<2x128xf32, #tpu.memory_space<vmem>>, %arg2: memref<50x2xf32, #tpu.memory_space<vmem>>, %arg3: memref<50x1xf32, #tpu.memory_space<vmem>>, %arg4: memref<2x50xf32, #tpu.memory_space<vmem>>, %arg5: memref<2x1xf32, #tpu.memory_space<vmem>>, %arg6: memref<2x128xf32, #tpu.memory_space<vmem>>) attributes {dimension_semantics = [#tpu.dimension_semantics<parallel>], iteration_bounds = array<i64: 1>, scalar_prefetch = 0 : i64, scratch_operands = 0 : i64, tpu.core_type = #tpu.core_type<tc>, window_params = [{transform_indices = @transform_0, window_bounds = array<i64: 2, 128>}, {pipeline_mode = #tpu.pipeline_mode<synchronous>, transform_indices = @transform_1, window_bounds = array<i64: 50, 2>}, {pipeline_mode = #tpu.pipeline_mode<synchronous>, transform_indices = @transform_2, window_bounds = array<i64: 50, 1>}, {pipeline_mode = #tpu.pipeline_mode<synchronous>, transform_indices = @transform_3, window_bounds = array<i64: 2, 50>}, {pipeline_mode = #tpu.pipeline_mode<synchronous>, transform_indices = @transform_4, window_bounds = array<i64: 2, 1>}, {transform_indices = @transform_5, window_bounds = array<i64: 2, 128>}]} {
    %c0 = arith.constant 0 : index
    %c0_0 = arith.constant 0 : index
    %0 = vector.load %arg1[%c0, %c0_0] : memref<2x128xf32, #tpu.memory_space<vmem>>, vector<2x128xf32>
    %c0_1 = arith.constant 0 : index
    %c0_2 = arith.constant 0 : index
    %1 = vector.load %arg2[%c0_1, %c0_2] : memref<50x2xf32, #tpu.memory_space<vmem>>, vector<50x2xf32>
    %2 = vector.extract_strided_slice %1 {offsets = [0, 0], sizes = [50, 1], strides = [1, 1]} : vector<50x2xf32> to vector<50x1xf32>
    %3 = vector.extract_strided_slice %0 {offsets = [0, 0], sizes = [1, 128], strides = [1, 1]} : vector<2x128xf32> to vector<1x128xf32>
    %4 = vector.broadcast %2 : vector<50x1xf32> to vector<50x128xf32>
    %5 = vector.broadcast %3 : vector<1x128xf32> to vector<50x128xf32>
    %6 = arith.mulf %4, %5 : vector<50x128xf32>
    %7 = vector.extract_strided_slice %1 {offsets = [0, 1], sizes = [50, 1], strides = [1, 1]} : vector<50x2xf32> to vector<50x1xf32>
    %8 = vector.extract_strided_slice %0 {offsets = [1, 0], sizes = [1, 128], strides = [1, 1]} : vector<2x128xf32> to vector<1x128xf32>
    %9 = vector.broadcast %7 : vector<50x1xf32> to vector<50x128xf32>
    %10 = vector.broadcast %8 : vector<1x128xf32> to vector<50x128xf32>
    %11 = arith.mulf %9, %10 : vector<50x128xf32>
    %12 = arith.addf %6, %11 : vector<50x128xf32>
    %c0_3 = arith.constant 0 : index
    %c0_4 = arith.constant 0 : index
    %13 = vector.load %arg3[%c0_3, %c0_4] : memref<50x1xf32, #tpu.memory_space<vmem>>, vector<50x1xf32>
    %14 = vector.broadcast %13 : vector<50x1xf32> to vector<50x128xf32>
    %15 = arith.addf %12, %14 : vector<50x128xf32>
    %16 = math.tanh %15 : vector<50x128xf32>
    %c0_5 = arith.constant 0 : index
    %c0_6 = arith.constant 0 : index
    %17 = vector.load %arg4[%c0_5, %c0_6] : memref<2x50xf32, #tpu.memory_space<vmem>>, vector<2x50xf32>
    %cst = arith.constant dense<0.000000e+00> : vector<2x128xf32>
    %18 = tpu.matmul %17, %16, %cst {dimension_numbers = #tpu.dot_dimension_numbers<[1], [0], [0], [1], [0, 0, 1, 1], [], []>} : vector<2x50xf32>, vector<50x128xf32>, vector<2x128xf32> -> vector<2x128xf32>
    %c0_7 = arith.constant 0 : index
    %c0_8 = arith.constant 0 : index
    %19 = vector.load %arg5[%c0_7, %c0_8] : memref<2x1xf32, #tpu.memory_space<vmem>>, vector<2x1xf32>
    %20 = vector.broadcast %19 : vector<2x1xf32> to vector<2x128xf32>
    %21 = arith.addf %18, %20 : vector<2x128xf32>
    %c0_9 = arith.constant 0 : index
    %c0_10 = arith.constant 0 : index
    %22 = vector.load %arg6[%c0_9, %c0_10] : memref<2x128xf32, #tpu.memory_space<vmem>>, vector<2x128xf32>
    tpu.vector_store %arg6[%c0_9, %c0_10], %21 {strides = array<i32>} : memref<2x128xf32, #tpu.memory_space<vmem>>, vector<2x128xf32>,
    return
  }
  func.func @transform_0(%arg0: i32) -> (i32, i32) {
    %c0_i32 = arith.constant 0 : i32
    %c0_i32_0 = arith.constant 0 : i32
    return %c0_i32, %arg0 : i32, i32
  }
  func.func @transform_1(%arg0: i32) -> (i32, i32) {
    %c0_i32 = arith.constant 0 : i32
    %c0_i32_0 = arith.constant 0 : i32
    %c0_i32_1 = arith.constant 0 : i32
    return %c0_i32, %c0_i32_0 : i32, i32
  }
  func.func @transform_2(%arg0: i32) -> (i32, i32) {
    %c0_i32 = arith.constant 0 : i32
    %c0_i32_0 = arith.constant 0 : i32
    %c0_i32_1 = arith.constant 0 : i32
    return %c0_i32, %c0_i32_0 : i32, i32
  }
  func.func @transform_3(%arg0: i32) -> (i32, i32) {
    %c0_i32 = arith.constant 0 : i32
    %c0_i32_0 = arith.constant 0 : i32
    %c0_i32_1 = arith.constant 0 : i32
    return %c0_i32, %c0_i32_0 : i32, i32
  }
  func.func @transform_4(%arg0: i32) -> (i32, i32) {
    %c0_i32 = arith.constant 0 : i32
    %c0_i32_0 = arith.constant 0 : i32
    %c0_i32_1 = arith.constant 0 : i32
    return %c0_i32, %c0_i32_0 : i32, i32
  }
  func.func @transform_5(%arg0: i32) -> (i32, i32) {
    %c0_i32 = arith.constant 0 : i32
    %c0_i32_0 = arith.constant 0 : i32
    return %c0_i32, %arg0 : i32, i32
  }
}

</mosaic_0001>

<llo_original>
// kernel: odefunc_forward.1
$region0: #{odefunc_forward.1}
  #allocation0 [shape = 'u32[]', space=smem, size = 0x4, offset = 0x4, fixed_abs, tag = 'smem constant byte address 0x4 - core index']
  #allocation1 [shape = 'u32[72,128]{1,0:T(1,128)}', space=vmem, size = 0x9000, scoped, tag = 'internal scratch']
  %s0 = inlined_call_operand.vmem [shape: f32[2,128], index: 0, kind: input, shape index: {}]
  %s1 = inlined_call_operand.vmem [shape: f32[50,2], index: 1, kind: input, shape index: {}]
  %s2 = inlined_call_operand.vmem [shape: f32[50,1], index: 2, kind: input, shape index: {}]
  %s3 = inlined_call_operand.vmem [shape: f32[2,50], index: 3, kind: input, shape index: {}]
  %s4 = inlined_call_operand.vmem [shape: f32[2,1], index: 4, kind: input, shape index: {}]
  %s5 = inlined_call_operand.vmem [shape: f32[2,128], index: 5, kind: output, shape index: {}]
  %s6 = sld [smem:[#allocation0]]
  $region30: #{odefunc_forward.1} parent=0
    _
  %s8 = ssub.s32 1, %s6
  %s9 = scalar_select 0, %s8, %s6
  // Predicated region
  $region2: #{odefunc_forward.1} parent=0 // pred_check
    _
  $region3: #{odefunc_forward.1} parent=0 // pred_check_branch
    %11 = sbr.rel (0) target = $region5
  $region4: #{odefunc_forward.1} parent=0 // pred_region
    _
  $region5: #{odefunc_forward.1} parent=0 // pred_fallthru
    _
  // Predicated region
  $region6: #{odefunc_forward.1} parent=0 // pred_check
    _
  $region7: #{odefunc_forward.1} parent=0 // pred_check_branch
    %13 = sbr.rel (0) target = $region9
  $region8: #{odefunc_forward.1} parent=0 // pred_region
    _
  $region9: #{odefunc_forward.1} parent=0 // pred_fallthru
    _
  // Predicated region
  $region10: #{odefunc_forward.1} parent=0 // pred_check
    _
  $region11: #{odefunc_forward.1} parent=0 // pred_check_branch
    %15 = sbr.rel (0) target = $region13
  $region12: #{odefunc_forward.1} parent=0 // pred_region
    _
  $region13: #{odefunc_forward.1} parent=0 // pred_fallthru
    _
  // Predicated region
  $region14: #{odefunc_forward.1} parent=0 // pred_check
    _
  $region15: #{odefunc_forward.1} parent=0 // pred_check_branch
    %17 = sbr.rel (0) target = $region17
  $region16: #{odefunc_forward.1} parent=0 // pred_region
    _
  $region17: #{odefunc_forward.1} parent=0 // pred_fallthru
    _
  // Predicated region
  $region18: #{odefunc_forward.1} parent=0 // pred_check
    _
  $region19: #{odefunc_forward.1} parent=0 // pred_check_branch
    %19 = sbr.rel (0) target = $region21
  $region20: #{odefunc_forward.1} parent=0 // pred_region
    _
  $region21: #{odefunc_forward.1} parent=0 // pred_fallthru
    _
  %v20 = vld [vmem:[%s0] sm:$0x3]
  %v21 = vld [vmem:[%s1] sm:$0xff]
  %v22 = vld [vmem:[%s1 + $0x8] sm:$0xff]
  %v23 = vld [vmem:[%s1 + $0x10] sm:$0xff]
  %v24 = vld [vmem:[%s1 + $0x18] sm:$0xff]
  %v25 = vld [vmem:[%s1 + $0x20] sm:$0xff]
  %v26 = vld [vmem:[%s1 + $0x28] sm:$0xff]
  %v27 = vld [vmem:[%s1 + $0x30] sm:$0x3]
  %29 = vset.pattern.permute.xlu0 0
  %30 = vperm.xlu0 %29, %v21
  %v31 = vpop.permute.xlu0 %30
  %34 = vset.pattern.permute.xlu0 0
  %35 = vperm.xlu0 %34, %v22
  %v36 = vpop.permute.xlu0 %35
  %39 = vset.pattern.permute.xlu0 0
  %40 = vperm.xlu0 %39, %v23
  %v41 = vpop.permute.xlu0 %40
  %44 = vset.pattern.permute.xlu0 0
  %45 = vperm.xlu0 %44, %v24
  %v46 = vpop.permute.xlu0 %45
  %49 = vset.pattern.permute.xlu0 0
  %50 = vperm.xlu0 %49, %v25
  %v51 = vpop.permute.xlu0 %50
  %54 = vset.pattern.permute.xlu0 0
  %55 = vperm.xlu0 %54, %v26
  %v56 = vpop.permute.xlu0 %55
  %59 = vset.pattern.permute.xlu0 0
  %60 = vperm.xlu0 %59, %v27
  %v61 = vpop.permute.xlu0 %60
  %v63 = vperm.slane %v20, 0
  %v64 = vmul.f32 %v31, %v63
  %v65 = vmul.f32 %v36, %v63
  %v66 = vmul.f32 %v41, %v63
  %v67 = vmul.f32 %v46, %v63
  %v68 = vmul.f32 %v51, %v63
  %v69 = vmul.f32 %v56, %v63
  %v70 = vmul.f32 %v61, %v63
  %71 = vset.pattern.permute.xlu0 1
  %72 = vperm.xlu0 %71, %v21
  %v73 = vpop.permute.xlu0 %72
  %75 = vset.pattern.permute.xlu0 1
  %76 = vperm.xlu0 %75, %v22
  %v77 = vpop.permute.xlu0 %76
  %79 = vset.pattern.permute.xlu0 1
  %80 = vperm.xlu0 %79, %v23
  %v81 = vpop.permute.xlu0 %80
  %83 = vset.pattern.permute.xlu0 1
  %84 = vperm.xlu0 %83, %v24
  %v85 = vpop.permute.xlu0 %84
  %87 = vset.pattern.permute.xlu0 1
  %88 = vperm.xlu0 %87, %v25
  %v89 = vpop.permute.xlu0 %88
  %91 = vset.pattern.permute.xlu0 1
  %92 = vperm.xlu0 %91, %v26
  %v93 = vpop.permute.xlu0 %92
  %95 = vset.pattern.permute.xlu0 1
  %96 = vperm.xlu0 %95, %v27
  %v97 = vpop.permute.xlu0 %96
  %v99 = vperm.slane %v20, 1
  %v100 = vmul.f32 %v73, %v99
  %v101 = vmul.f32 %v77, %v99
  %v102 = vmul.f32 %v81, %v99
  %v103 = vmul.f32 %v85, %v99
  %v104 = vmul.f32 %v89, %v99
  %v105 = vmul.f32 %v93, %v99
  %v106 = vmul.f32 %v97, %v99
  %v107 = vadd.f32 %v64, %v100
  %v108 = vadd.f32 %v65, %v101
  %v109 = vadd.f32 %v66, %v102
  %v110 = vadd.f32 %v67, %v103
  %v111 = vadd.f32 %v68, %v104
  %v112 = vadd.f32 %v69, %v105
  %v113 = vadd.f32 %v70, %v106
  %v114 = vld [vmem:[%s2] sm:$0xff]
  %v115 = vld [vmem:[%s2 + $0x8] sm:$0xff]
  %v116 = vld [vmem:[%s2 + $0x10] sm:$0xff]
  %v117 = vld [vmem:[%s2 + $0x18] sm:$0xff]
  %v118 = vld [vmem:[%s2 + $0x20] sm:$0xff]
  %v119 = vld [vmem:[%s2 + $0x28] sm:$0xff]
  %v120 = vld [vmem:[%s2 + $0x30] sm:$0x3]
  %122 = vset.pattern.permute.xlu0 0
  %123 = vperm.xlu0 %122, %v114
  %v124 = vpop.permute.xlu0 %123
  %127 = vset.pattern.permute.xlu0 0
  %128 = vperm.xlu0 %127, %v115
  %v129 = vpop.permute.xlu0 %128
  %132 = vset.pattern.permute.xlu0 0
  %133 = vperm.xlu0 %132, %v116
  %v134 = vpop.permute.xlu0 %133
  %137 = vset.pattern.permute.xlu0 0
  %138 = vperm.xlu0 %137, %v117
  %v139 = vpop.permute.xlu0 %138
  %142 = vset.pattern.permute.xlu0 0
  %143 = vperm.xlu0 %142, %v118
  %v144 = vpop.permute.xlu0 %143
  %147 = vset.pattern.permute.xlu0 0
  %148 = vperm.xlu0 %147, %v119
  %v149 = vpop.permute.xlu0 %148
  %152 = vset.pattern.permute.xlu0 0
  %153 = vperm.xlu0 %152, %v120
  %v154 = vpop.permute.xlu0 %153
  %v156 = vadd.f32 %v107, %v124
  %v157 = vadd.f32 %v108, %v129
  %v158 = vadd.f32 %v109, %v134
  %v159 = vadd.f32 %v110, %v139
  %v160 = vadd.f32 %v111, %v144
  %v161 = vadd.f32 %v112, %v149
  %v162 = vadd.f32 %v113, %v154
  %v163 = vtanh.pop %v156
  %v164 = vtanh.pop %v157
  %v165 = vtanh.pop %v158
  %v166 = vtanh.pop %v159
  %v167 = vtanh.pop %v160
  %v168 = vtanh.pop %v161
  %v169 = vtanh.pop %v162
  %v170 = vld [vmem:[%s3] sm:$0x3]
  %v171 = vld [vmem:[%s4] sm:$0x3]
  %173 = vset.pattern.permute.xlu0 0
  %174 = vperm.xlu0 %173, %v171
  %v175 = vpop.permute.xlu0 %174
  %vm177 = vcmask 408576
  %v179 = vsel %vm177, %v170, 0
  %vm181 = vcmask 1041408
  %v183 = vsel %vm181, %v169, 0
  %185 = vmatpush.msra.mxu0 0.0
  %186 = vmatpush.msra.mxu0 0.0
  %187 = vmatpush.msra.mxu0 0.0
  %188 = vmatpush.msra.mxu0 0.0
  %189 = vmatpush.msra.mxu0 0.0
  %190 = vmatpush.msra.mxu0 0.0
  %191 = vmatpush.msra.mxu0 0.0
  %192 = vmatpush.msra.mxu0 0.0
  %193 = vmatpush.msra.mxu0 0.0
  %194 = vmatpush.msra.mxu0 %v183
  %195 = vmatpush.msra.mxu0 %v168
  %196 = vmatpush.msra.mxu0 %v167
  %197 = vmatpush.msra.mxu0 %v166
  %198 = vmatpush.msra.mxu0 %v165
  %199 = vmatpush.msra.mxu0 %v164
  %200 = vmatpush.msra.mxu0 %v163
  %201 = vmatmul.f32.gmra.mxu0 %v179
  %v202 = vpop.f32.mrf.mxu0
  %v203 = vadd.f32 %v175, %v202
  %204 = vdwg.mxu0
  %205 = vst [vmem:[%s5] sm:$0x3] %v203
  // Predicated region
  $region22: #{odefunc_forward.1} parent=0 // pred_check
    _
  $region23: #{odefunc_forward.1} parent=0 // pred_check_branch
    %207 = sbr.rel (0) target = $region25
  $region24: #{odefunc_forward.1} parent=0 // pred_region
    _
  $region25: #{odefunc_forward.1} parent=0 // pred_fallthru
    _
  // Predicated region
  $region26: #{odefunc_forward.1} parent=0 // pred_check
    _
  $region27: #{odefunc_forward.1} parent=0 // pred_check_branch
    %209 = sbr.rel (0) target = $region29
  $region28: #{odefunc_forward.1} parent=0 // pred_region
    _
  $region29: #{odefunc_forward.1} parent=0 // pred_fallthru
    _

</llo_original>
